<compile_context>
chip_gen: v5e
topology: v5e:2x2
jax: 0.10.0
libtpu: 0.0.40
codegen_flags: <defaults>
</compile_context>

<pallas_src>
import functools

import jax
import jax.numpy as jnp
from jax.experimental import pallas as pl
from jax.experimental.pallas import tpu as pltpu


LEAKY_SLOPE = 0.01  # nn.LeakyReLU default negative_slope
LANE = 128          # TPU lane width


def _round_up(n, m):
    return ((n + m - 1) // m) * m


def _cdiv(a, b):
    return -(-a // b)


def _mlp_kernel(n_linear, x_ref, *refs):
    """refs = (w1, b1, w2, b2, ..., wn, bn, out_ref). All f32."""
    out_ref = refs[-1]
    param_refs = refs[:-1]
    h = x_ref[...]
    for i in range(n_linear):
        w = param_refs[2 * i][...]
        b = param_refs[2 * i + 1][...]
        h = jnp.dot(h, w, preferred_element_type=jnp.float32) + b
        if i < n_linear - 1:  # activation after every Linear except the last
            h = jnp.maximum(h, LEAKY_SLOPE * h)  # LeakyReLU: mul + max on the VPU
    out_ref[...] = h.astype(out_ref.dtype)


def _pad_params_lane_dense(params, lane=LANE):
    """Zero-pad every layer's output dim (and the matching next-layer input dim) to a
    multiple of 128 lanes so all intermediates are lane-dense. First layer K stays obs_dim."""
    padded = []
    prev_out_pad = None
    for i, (w, b) in enumerate(params):
        k_in, n_out = w.shape
        k_pad = k_in if i == 0 else prev_out_pad
        n_pad = _round_up(max(n_out, lane), lane)
        w_p = jnp.zeros((k_pad, n_pad), w.dtype).at[:k_in, :n_out].set(w)
        b_p = jnp.zeros((1, n_pad), b.dtype).at[:, :n_out].set(b)
        padded.append((w_p, b_p))
        prev_out_pad = n_pad
    return padded


def _choose_batch_tiling(B, max_batch_tile, two_core_threshold=2048):
    """Pick (batch_tile, B_padded, num_tiles) with minimal padding.

    * padding is at most 8*num_tiles - 1 rows (vs. rounding B up to a fixed tile size)
    * B > two_core_threshold forces num_tiles >= 2 so v7x's two TensorCores both get work
    """
    num_tiles = max(1, _cdiv(B, max_batch_tile))
    if B > two_core_threshold:
        num_tiles = max(num_tiles, 2)
    batch_tile = _round_up(_cdiv(B, num_tiles), 8)
    B_padded = num_tiles * batch_tile
    return batch_tile, B_padded, num_tiles


def dqn_vector_feature_forward(x, params, *, max_batch_tile=4096):
    """x: [B, obs_dim] float32. params: list of (W [in,out], b [1,out]) per Linear."""
    B, obs_dim = x.shape
    n_linear = len(params)
    n_actions = params[-1][0].shape[1]

    # Empty-batch guard (RL rollout edge case): nothing to do.
    if B == 0:
        return jnp.zeros((0, n_actions), jnp.float32)

    # Lane-dense padding of all layer outputs (hidden + final) to multiples of 128.
    padded_params = _pad_params_lane_dense(params)
    n_out_padded = padded_params[-1][0].shape[1]

    # Batch tiling with minimal padding; >=2 tiles for large B (v7x megacore).
    batch_tile, B_padded, num_tiles = _choose_batch_tiling(B, max_batch_tile)
    x_in = x if B_padded == B else jnp.pad(x, ((0, B_padded - B), (0, 0)))
    grid = (num_tiles,)

    # Flatten params into the call argument list.
    flat_params = []
    for w, b in padded_params:
        flat_params.extend([w, b])

    # x / out tiles move with the grid index; weights & biases are grid-invariant
    # (single-buffered, resident in VMEM for the whole grid).
    in_specs = [pl.BlockSpec((batch_tile, obs_dim), lambda i: (i, 0))]
    for w, b in padded_params:
        in_specs.append(
            pl.BlockSpec(w.shape, lambda i: (0, 0), pipeline_mode=pl.Buffered(1)))
        in_specs.append(
            pl.BlockSpec(b.shape, lambda i: (0, 0), pipeline_mode=pl.Buffered(1)))
    out_spec = pl.BlockSpec((batch_tile, n_out_padded), lambda i: (i, 0))

    # Advisory cost estimate for XLA scheduling around this micro-kernel.
    flops = 2 * B_padded * sum(w.shape[0] * w.shape[1] for w, _ in padded_params)
    param_bytes = sum(w.size * w.dtype.itemsize + b.size * b.dtype.itemsize
                      for w, b in padded_params)
    bytes_accessed = (x_in.size * x_in.dtype.itemsize
                      + param_bytes
                      + B_padded * n_out_padded * 4)
    cost = pl.CostEstimate(flops=flops, transcendentals=0, bytes_accessed=bytes_accessed)

    kernel = functools.partial(_mlp_kernel, n_linear)

    out_padded = pl.pallas_call(
        kernel,
        out_shape=jax.ShapeDtypeStruct((B_padded, n_out_padded), jnp.float32),
        grid=grid,
        in_specs=in_specs,
        out_specs=out_spec,
        compiler_params=pltpu.CompilerParams(
            dimension_semantics=("parallel",),
            vmem_limit_bytes=32 * 1024 * 1024,  # raise v5e's 16 MiB default; safe everywhere
        ),
        cost_estimate=cost,
    )(x_in, *flat_params)

    # Strip batch padding and lane padding. Under jit this slice fuses with the consumer;
    # downstream code may also consume the padded [B_padded, 128] output directly.
    return out_padded[:B, :n_actions]


def init_params(key, obs_dim, n_actions, num_hidden_layers, size_hidden_layers):
    """PyTorch-style uniform(-1/sqrt(fan_in), 1/sqrt(fan_in)) init; weights stored [in, out]."""
    dims = [obs_dim]
    dims += [size_hidden_layers] * (1 + max(0, num_hidden_layers - 2))
    dims += [n_actions]

    params = []
    for fan_in, fan_out in zip(dims[:-1], dims[1:]):
        key, kw, kb = jax.random.split(key, 3)
        bound = 1.0 / (fan_in ** 0.5)
        w = jax.random.uniform(kw, (fan_in, fan_out), jnp.float32, -bound, bound)
        b = jax.random.uniform(kb, (1, fan_out), jnp.float32, -bound, bound)
        params.append((w, b))
    return params


def reference_forward(x, params):
    h = x
    for i, (w, b) in enumerate(params):
        h = h @ w + b
        if i < len(params) - 1:
            h = jnp.where(h > 0, h, LEAKY_SLOPE * h)
    return h


if __name__ == "__main__":
    # Module hyperparameters (small, consistent with the forward pass).
    obs_dim = 32            # obs_shape = (32,)
    n_actions = 6
    num_hidden_layers = 3
    size_hidden_layers = 32
    batch = 8

    key = jax.random.PRNGKey(0)
    key, kx = jax.random.split(key)
    x = jax.random.normal(kx, (batch, obs_dim), jnp.float32)

    params = init_params(key, obs_dim, n_actions, num_hidden_layers, size_hidden_layers)

    out = dqn_vector_feature_forward(x, params)
    out = jax.block_until_ready(out)

    ref = reference_forward(x, params)
    assert out.shape == (batch, n_actions)
    assert jnp.allclose(out, ref, atol=1e-5, rtol=1e-5), "mismatch vs reference"

    # Non-divisible batch (exercises minimal padding: 1037 -> 1040, single grid step).
    key, kx2 = jax.random.split(key)
    x2 = jax.random.normal(kx2, (1037, obs_dim), jnp.float32)
    out2 = jax.block_until_ready(dqn_vector_feature_forward(x2, params))
    ref2 = reference_forward(x2, params)
    assert out2.shape == (1037, n_actions)
    assert jnp.allclose(out2, ref2, atol=1e-4, rtol=1e-4), "mismatch vs reference (1037)"

    # Large batch (exercises the >=2-tile split for v7x megacore: 2 grid steps).
    key, kx3 = jax.random.split(key)
    x3 = jax.random.normal(kx3, (2500, obs_dim), jnp.float32)
    out3 = jax.block_until_ready(dqn_vector_feature_forward(x3, params))
    ref3 = reference_forward(x3, params)
    assert out3.shape == (2500, n_actions)
    assert jnp.allclose(out3, ref3, atol=1e-4, rtol=1e-4), "mismatch vs reference (2500)"

    # Empty batch edge case.
    out0 = jax.block_until_ready(
        dqn_vector_feature_forward(jnp.zeros((0, obs_dim), jnp.float32), params))
    assert out0.shape == (0, n_actions)

    print("KERNEL_OK")
</pallas_src>

<mosaic_0001>
module attributes {stable_mosaic.version = 11 : i64} {
  func.func @_mlp_kernel(%arg0: i32, %arg1: memref<8x32xf32, #tpu.memory_space<vmem>>, %arg2: memref<32x128xf32, #tpu.memory_space<vmem>>, %arg3: memref<1x128xf32, #tpu.memory_space<vmem>>, %arg4: memref<128x128xf32, #tpu.memory_space<vmem>>, %arg5: memref<1x128xf32, #tpu.memory_space<vmem>>, %arg6: memref<128x128xf32, #tpu.memory_space<vmem>>, %arg7: memref<1x128xf32, #tpu.memory_space<vmem>>, %arg8: memref<8x128xf32, #tpu.memory_space<vmem>>) attributes {dimension_semantics = [#tpu.dimension_semantics<parallel>], iteration_bounds = array<i64: 1>, scalar_prefetch = 0 : i64, scratch_operands = 0 : i64, tpu.core_type = #tpu.core_type<tc>, window_params = [{transform_indices = @transform_0, window_bounds = array<i64: 8, 32>}, {pipeline_mode = #tpu.pipeline_mode<synchronous>, transform_indices = @transform_1, window_bounds = array<i64: 32, 128>}, {pipeline_mode = #tpu.pipeline_mode<synchronous>, transform_indices = @transform_2, window_bounds = array<i64: 1, 128>}, {pipeline_mode = #tpu.pipeline_mode<synchronous>, transform_indices = @transform_3, window_bounds = array<i64: 128, 128>}, {pipeline_mode = #tpu.pipeline_mode<synchronous>, transform_indices = @transform_4, window_bounds = array<i64: 1, 128>}, {pipeline_mode = #tpu.pipeline_mode<synchronous>, transform_indices = @transform_5, window_bounds = array<i64: 128, 128>}, {pipeline_mode = #tpu.pipeline_mode<synchronous>, transform_indices = @transform_6, window_bounds = array<i64: 1, 128>}, {transform_indices = @transform_7, window_bounds = array<i64: 8, 128>}]} {
    %c0 = arith.constant 0 : index
    %c0_0 = arith.constant 0 : index
    %0 = vector.load %arg1[%c0, %c0_0] : memref<8x32xf32, #tpu.memory_space<vmem>>, vector<8x32xf32>
    %c0_1 = arith.constant 0 : index
    %c0_2 = arith.constant 0 : index
    %1 = vector.load %arg2[%c0_1, %c0_2] : memref<32x128xf32, #tpu.memory_space<vmem>>, vector<32x128xf32>
    %c0_3 = arith.constant 0 : index
    %c0_4 = arith.constant 0 : index
    %2 = vector.load %arg3[%c0_3, %c0_4] : memref<1x128xf32, #tpu.memory_space<vmem>>, vector<1x128xf32>
    %cst = arith.constant dense<0.000000e+00> : vector<8x128xf32>
    %3 = tpu.matmul %0, %1, %cst {dimension_numbers = #tpu.dot_dimension_numbers<[1], [0], [0], [1], [0, 0, 1, 1], [], []>} : vector<8x32xf32>, vector<32x128xf32>, vector<8x128xf32> -> vector<8x128xf32>
    %4 = vector.broadcast %2 : vector<1x128xf32> to vector<8x128xf32>
    %5 = arith.addf %3, %4 : vector<8x128xf32>
    %cst_5 = arith.constant 0.00999999977 : f32
    %6 = vector.broadcast %cst_5 : f32 to vector<8x128xf32>
    %7 = arith.mulf %6, %5 : vector<8x128xf32>
    %8 = arith.maximumf %5, %7 : vector<8x128xf32>
    %c0_6 = arith.constant 0 : index
    %c0_7 = arith.constant 0 : index
    %9 = vector.load %arg4[%c0_6, %c0_7] : memref<128x128xf32, #tpu.memory_space<vmem>>, vector<128x128xf32>
    %c0_8 = arith.constant 0 : index
    %c0_9 = arith.constant 0 : index
    %10 = vector.load %arg5[%c0_8, %c0_9] : memref<1x128xf32, #tpu.memory_space<vmem>>, vector<1x128xf32>
    %cst_10 = arith.constant dense<0.000000e+00> : vector<8x128xf32>
    %11 = tpu.matmul %8, %9, %cst_10 {dimension_numbers = #tpu.dot_dimension_numbers<[1], [0], [0], [1], [0, 0, 1, 1], [], []>} : vector<8x128xf32>, vector<128x128xf32>, vector<8x128xf32> -> vector<8x128xf32>
    %12 = vector.broadcast %10 : vector<1x128xf32> to vector<8x128xf32>
    %13 = arith.addf %11, %12 : vector<8x128xf32>
    %cst_11 = arith.constant 0.00999999977 : f32
    %14 = vector.broadcast %cst_11 : f32 to vector<8x128xf32>
    %15 = arith.mulf %14, %13 : vector<8x128xf32>
    %16 = arith.maximumf %13, %15 : vector<8x128xf32>
    %c0_12 = arith.constant 0 : index
    %c0_13 = arith.constant 0 : index
    %17 = vector.load %arg6[%c0_12, %c0_13] : memref<128x128xf32, #tpu.memory_space<vmem>>, vector<128x128xf32>
    %c0_14 = arith.constant 0 : index
    %c0_15 = arith.constant 0 : index
    %18 = vector.load %arg7[%c0_14, %c0_15] : memref<1x128xf32, #tpu.memory_space<vmem>>, vector<1x128xf32>
    %cst_16 = arith.constant dense<0.000000e+00> : vector<8x128xf32>
    %19 = tpu.matmul %16, %17, %cst_16 {dimension_numbers = #tpu.dot_dimension_numbers<[1], [0], [0], [1], [0, 0, 1, 1], [], []>} : vector<8x128xf32>, vector<128x128xf32>, vector<8x128xf32> -> vector<8x128xf32>
    %20 = vector.broadcast %18 : vector<1x128xf32> to vector<8x128xf32>
    %21 = arith.addf %19, %20 : vector<8x128xf32>
    %c0_17 = arith.constant 0 : index
    %c0_18 = arith.constant 0 : index
    %22 = vector.load %arg8[%c0_17, %c0_18] : memref<8x128xf32, #tpu.memory_space<vmem>>, vector<8x128xf32>
    tpu.vector_store %arg8[%c0_17, %c0_18], %21 {strides = array<i32>} : memref<8x128xf32, #tpu.memory_space<vmem>>, vector<8x128xf32>,
    return
  }
  func.func @transform_0(%arg0: i32) -> (i32, i32) {
    %c0_i32 = arith.constant 0 : i32
    %c0_i32_0 = arith.constant 0 : i32
    return %arg0, %c0_i32 : i32, i32
  }
  func.func @transform_1(%arg0: i32) -> (i32, i32) {
    %c0_i32 = arith.constant 0 : i32
    %c0_i32_0 = arith.constant 0 : i32
    %c0_i32_1 = arith.constant 0 : i32
    return %c0_i32, %c0_i32_0 : i32, i32
  }
  func.func @transform_2(%arg0: i32) -> (i32, i32) {
    %c0_i32 = arith.constant 0 : i32
    %c0_i32_0 = arith.constant 0 : i32
    %c0_i32_1 = arith.constant 0 : i32
    return %c0_i32, %c0_i32_0 : i32, i32
  }
  func.func @transform_3(%arg0: i32) -> (i32, i32) {
    %c0_i32 = arith.constant 0 : i32
    %c0_i32_0 = arith.constant 0 : i32
    %c0_i32_1 = arith.constant 0 : i32
    return %c0_i32, %c0_i32_0 : i32, i32
  }
  func.func @transform_4(%arg0: i32) -> (i32, i32) {
    %c0_i32 = arith.constant 0 : i32
    %c0_i32_0 = arith.constant 0 : i32
    %c0_i32_1 = arith.constant 0 : i32
    return %c0_i32, %c0_i32_0 : i32, i32
  }
  func.func @transform_5(%arg0: i32) -> (i32, i32) {
    %c0_i32 = arith.constant 0 : i32
    %c0_i32_0 = arith.constant 0 : i32
    %c0_i32_1 = arith.constant 0 : i32
    return %c0_i32, %c0_i32_0 : i32, i32
  }
  func.func @transform_6(%arg0: i32) -> (i32, i32) {
    %c0_i32 = arith.constant 0 : i32
    %c0_i32_0 = arith.constant 0 : i32
    %c0_i32_1 = arith.constant 0 : i32
    return %c0_i32, %c0_i32_0 : i32, i32
  }
  func.func @transform_7(%arg0: i32) -> (i32, i32) {
    %c0_i32 = arith.constant 0 : i32
    %c0_i32_0 = arith.constant 0 : i32
    return %arg0, %c0_i32 : i32, i32
  }
}

</mosaic_0001>

<llo_original>
// kernel: tpu_custom_call.1
$region0: #{tpu_custom_call.1}
  #allocation0 [shape = 'u32[]', space=smem, size = 0x4, offset = 0x4, fixed_abs, tag = 'smem constant byte address 0x4 - core index']
  #allocation1 [shape = 'u32[72,128]{1,0:T(1,128)}', space=vmem, size = 0x9000, scoped, tag = 'internal scratch']
  %s0 = inlined_call_operand.hbm [shape: f32[8,32], index: 0, kind: input, shape index: {}]
  %s1 = inlined_call_operand.hbm [shape: f32[32,128], index: 1, kind: input, shape index: {}]
  %s2 = inlined_call_operand.vmem [shape: f32[1,128], index: 2, kind: input, shape index: {}]
  %s3 = inlined_call_operand.hbm [shape: f32[128,128], index: 3, kind: input, shape index: {}]
  %s4 = inlined_call_operand.vmem [shape: f32[1,128], index: 4, kind: input, shape index: {}]
  %s5 = inlined_call_operand.hbm [shape: f32[128,128], index: 5, kind: input, shape index: {}]
  %s6 = inlined_call_operand.vmem [shape: f32[1,128], index: 6, kind: input, shape index: {}]
  %s7 = inlined_call_operand.hbm [shape: f32[8,128], index: 7, kind: output, shape index: {}]
  %s8 = sld [smem:[#allocation0]]
  $region54: #{tpu_custom_call.1} parent=0
    _
  %s10 = ssub.s32 1, %s8
  %s11 = scalar_select 0, %s10, %s8
  $region1: #{tpu_custom_call.1} parent=0
    #allocation2 [shape = 'u8[4096]{0}', space=vmem, size = 0x1000, scoped, tag = 'input window, operand 0, single buffered']
    #allocation3 [shape = 's32[1]{0}', space=sflag, size = 0x4, scoped, tag = 'scoped memory for tpu_custom_call.1']
    #allocation4 [shape = 's32[1]{0}', space=sflag, size = 0x4, scoped, tag = 'scoped memory for tpu_custom_call.1']
    #allocation5 [shape = 'u8[16384]{0}', space=vmem, size = 0x4000, scoped, tag = 'input window, operand 1, single buffered']
    #allocation6 [shape = 's32[1]{0}', space=sflag, size = 0x4, scoped, tag = 'scoped memory for tpu_custom_call.1']
    #allocation7 [shape = 'u8[65536]{0}', space=vmem, size = 0x10000, scoped, tag = 'input window, operand 3, single buffered']
    #allocation8 [shape = 'u8[65536]{0}', space=vmem, size = 0x10000, scoped, tag = 'input window, operand 5, single buffered']
    #allocation9 [shape = 's32[1]{0}', space=sflag, size = 0x4, scoped, tag = 'scoped memory for tpu_custom_call.1']
    #allocation10 [shape = 'u8[4096]{0}', space=vmem, size = 0x1000, scoped, tag = 'output window, operand 0, single buffered']
    %12 = vsyncpa [#allocation3], 0
    %13 = vsyncpa [#allocation6], 0
    %14 = vsyncpa [#allocation9], 0
    %15 = vsyncpa [#allocation4], 0
    // Predicated region
    $region2: #{tpu_custom_call.1} parent=1 // pred_check
      _
    $region3: #{tpu_custom_call.1} parent=1 // pred_check_branch
      %17 = sbr.rel (0) target = $region5
    $region4: #{tpu_custom_call.1} parent=1 // pred_region
      %19 = vsyncadd [#allocation3], 0
      %s21 = sshll.u32 %s0, 4
      %s22 = int_to_ptr.hbm [resolvable:$true] %s21
      %s23 = sshll.u32 [#allocation2], 4
      %s24 = int_to_ptr.vmem [resolvable:$true] %s23
      %26 = dma.hbm_to_vmem [thread:$0]  %s22, 128, %s24, [#allocation3]
    $region5: #{tpu_custom_call.1} parent=1 // pred_fallthru
      _
    // Predicated region
    $region6: #{tpu_custom_call.1} parent=1 // pred_check
      _
    $region7: #{tpu_custom_call.1} parent=1 // pred_check_branch
      %28 = sbr.rel (0) target = $region9
    $region8: #{tpu_custom_call.1} parent=1 // pred_region
      %30 = vsyncadd [#allocation6], 0
      %s31 = sshll.u32 %s1, 4
      %s32 = int_to_ptr.hbm [resolvable:$true] %s31
      %s33 = sshll.u32 [#allocation5], 4
      %s34 = int_to_ptr.vmem [resolvable:$true] %s33
      %39 = dma.hbm_to_vmem [thread:$0]  %s32, 512, %s34, [#allocation6], 128, 128, 8
    $region9: #{tpu_custom_call.1} parent=1 // pred_fallthru
      _
    // Predicated region
    $region10: #{tpu_custom_call.1} parent=1 // pred_check
      _
    $region11: #{tpu_custom_call.1} parent=1 // pred_check_branch
      %41 = sbr.rel (0) target = $region13
    $region12: #{tpu_custom_call.1} parent=1 // pred_region
      _
    $region13: #{tpu_custom_call.1} parent=1 // pred_fallthru
      _
    // Predicated region
    $region14: #{tpu_custom_call.1} parent=1 // pred_check
      _
    $region15: #{tpu_custom_call.1} parent=1 // pred_check_branch
      %43 = sbr.rel (0) target = $region17
    $region16: #{tpu_custom_call.1} parent=1 // pred_region
      %45 = vsyncadd [#allocation6], 0
      %s46 = sshll.u32 %s3, 4
      %s47 = int_to_ptr.hbm [resolvable:$true] %s46
      %s48 = sshll.u32 [#allocation7], 4
      %s49 = int_to_ptr.vmem [resolvable:$true] %s48
      %54 = dma.hbm_to_vmem [thread:$0]  %s47, 2048, %s49, [#allocation6], 128, 128, 8
    $region17: #{tpu_custom_call.1} parent=1 // pred_fallthru
      _
    // Predicated region
    $region18: #{tpu_custom_call.1} parent=1 // pred_check
      _
    $region19: #{tpu_custom_call.1} parent=1 // pred_check_branch
      %56 = sbr.rel (0) target = $region21
    $region20: #{tpu_custom_call.1} parent=1 // pred_region
      _
    $region21: #{tpu_custom_call.1} parent=1 // pred_fallthru
      _
    // Predicated region
    $region22: #{tpu_custom_call.1} parent=1 // pred_check
      _
    $region23: #{tpu_custom_call.1} parent=1 // pred_check_branch
      %58 = sbr.rel (0) target = $region25
    $region24: #{tpu_custom_call.1} parent=1 // pred_region
      %60 = vsyncadd [#allocation9], 0
      %s61 = sshll.u32 %s5, 4
      %s62 = int_to_ptr.hbm [resolvable:$true] %s61
      %s63 = sshll.u32 [#allocation8], 4
      %s64 = int_to_ptr.vmem [resolvable:$true] %s63
      %69 = dma.hbm_to_vmem [thread:$0]  %s62, 2048, %s64, [#allocation9], 128, 128, 8
    $region25: #{tpu_custom_call.1} parent=1 // pred_fallthru
      _
    // Predicated region
    $region26: #{tpu_custom_call.1} parent=1 // pred_check
      _
    $region27: #{tpu_custom_call.1} parent=1 // pred_check_branch
      %71 = sbr.rel (0) target = $region29
    $region28: #{tpu_custom_call.1} parent=1 // pred_region
      _
    $region29: #{tpu_custom_call.1} parent=1 // pred_fallthru
      _
    // Predicated region
    $region30: #{tpu_custom_call.1} parent=1 // pred_check
      _
    $region31: #{tpu_custom_call.1} parent=1 // pred_check_branch
      %73 = sbr.rel (0) target = $region33
    $region32: #{tpu_custom_call.1} parent=1 // pred_region
      %75 = dma.done [#allocation3], 128
    $region33: #{tpu_custom_call.1} parent=1 // pred_fallthru
      _
    // Predicated region
    $region34: #{tpu_custom_call.1} parent=1 // pred_check
      _
    $region35: #{tpu_custom_call.1} parent=1 // pred_check_branch
      %77 = sbr.rel (0) target = $region37
    $region36: #{tpu_custom_call.1} parent=1 // pred_region
      %79 = dma.done [#allocation6], 512
    $region37: #{tpu_custom_call.1} parent=1 // pred_fallthru
      _
    // Predicated region
    $region38: #{tpu_custom_call.1} parent=1 // pred_check
      _
    $region39: #{tpu_custom_call.1} parent=1 // pred_check_branch
      %81 = sbr.rel (0) target = $region41
    $region40: #{tpu_custom_call.1} parent=1 // pred_region
      %83 = dma.done [#allocation6], 2048
    $region41: #{tpu_custom_call.1} parent=1 // pred_fallthru
      _
    // Predicated region
    $region42: #{tpu_custom_call.1} parent=1 // pred_check
      _
    $region43: #{tpu_custom_call.1} parent=1 // pred_check_branch
      %85 = sbr.rel (0) target = $region45
    $region44: #{tpu_custom_call.1} parent=1 // pred_region
      %87 = dma.done [#allocation9], 2048
    $region45: #{tpu_custom_call.1} parent=1 // pred_fallthru
      _
    %v88 = vld [vmem:[#allocation2] sm:$0xff]
    %v89 = vld [vmem:[#allocation5] sm:$0xff]
    %v90 = vld [vmem:[#allocation5 + $0x8] sm:$0xff]
    %v91 = vld [vmem:[#allocation5 + $0x10] sm:$0xff]
    %v92 = vld [vmem:[#allocation5 + $0x18] sm:$0xff]
    %v93 = vld [vmem:[%s2] sm:$0x1]
    %v95 = vperm.slane %v93, 0
    %vm97 = vcmask 261120
    %v99 = vsel %vm97, %v88, 0
    %101 = vmatpush.msra.mxu0 0.0
    %102 = vmatpush.msra.mxu0 0.0
    %103 = vmatpush.msra.mxu0 0.0
    %104 = vmatpush.msra.mxu0 0.0
    %105 = vmatpush.msra.mxu0 0.0
    %106 = vmatpush.msra.mxu0 0.0
    %107 = vmatpush.msra.mxu0 0.0
    %108 = vmatpush.msra.mxu0 0.0
    %109 = vmatpush.msra.mxu0 0.0
    %110 = vmatpush.msra.mxu0 0.0
    %111 = vmatpush.msra.mxu0 0.0
    %112 = vmatpush.msra.mxu0 0.0
    %113 = vmatpush.msra.mxu0 %v92
    %114 = vmatpush.msra.mxu0 %v91
    %115 = vmatpush.msra.mxu0 %v90
    %116 = vmatpush.msra.mxu0 %v89
    %117 = vmatmul.f32.gmra.mxu0 %v99
    %v118 = vpop.f32.mrf.mxu0
    %v119 = vadd.f32 %v95, %v118
    %120 = vdwg.mxu0
    %v121 = vmul.f32 %v119, 0.01
    %v122 = vmax.f32 %v119, %v121
    %v123 = vld [vmem:[#allocation7] sm:$0xff]
    %v124 = vld [vmem:[#allocation7 + $0x8] sm:$0xff]
    %v125 = vld [vmem:[#allocation7 + $0x10] sm:$0xff]
    %v126 = vld [vmem:[#allocation7 + $0x18] sm:$0xff]
    %v127 = vld [vmem:[#allocation7 + $0x20] sm:$0xff]
    %v128 = vld [vmem:[#allocation7 + $0x28] sm:$0xff]
    %v129 = vld [vmem:[#allocation7 + $0x30] sm:$0xff]
    %v130 = vld [vmem:[#allocation7 + $0x38] sm:$0xff]
    %v131 = vld [vmem:[#allocation7 + $0x40] sm:$0xff]
    %v132 = vld [vmem:[#allocation7 + $0x48] sm:$0xff]
    %v133 = vld [vmem:[#allocation7 + $0x50] sm:$0xff]
    %v134 = vld [vmem:[#allocation7 + $0x58] sm:$0xff]
    %v135 = vld [vmem:[#allocation7 + $0x60] sm:$0xff]
    %v136 = vld [vmem:[#allocation7 + $0x68] sm:$0xff]
    %v137 = vld [vmem:[#allocation7 + $0x70] sm:$0xff]
    %v138 = vld [vmem:[#allocation7 + $0x78] sm:$0xff]
    %v139 = vld [vmem:[%s4] sm:$0x1]
    %v141 = vperm.slane %v139, 0
    %143 = vmatpush.msra.mxu0 %v138
    %144 = vmatpush.msra.mxu0 %v137
    %145 = vmatpush.msra.mxu0 %v136
    %146 = vmatpush.msra.mxu0 %v135
    %147 = vmatpush.msra.mxu0 %v134
    %148 = vmatpush.msra.mxu0 %v133
    %149 = vmatpush.msra.mxu0 %v132
    %150 = vmatpush.msra.mxu0 %v131
    %151 = vmatpush.msra.mxu0 %v130
    %152 = vmatpush.msra.mxu0 %v129
    %153 = vmatpush.msra.mxu0 %v128
    %154 = vmatpush.msra.mxu0 %v127
    %155 = vmatpush.msra.mxu0 %v126
    %156 = vmatpush.msra.mxu0 %v125
    %157 = vmatpush.msra.mxu0 %v124
    %158 = vmatpush.msra.mxu0 %v123
    %159 = vmatmul.f32.gmra.mxu0 %v122
    %v160 = vpop.f32.mrf.mxu0
    %v161 = vadd.f32 %v141, %v160
    %162 = vdwg.mxu0
    %v163 = vmul.f32 %v161, 0.01
    %v164 = vmax.f32 %v161, %v163
    %v165 = vld [vmem:[#allocation8] sm:$0xff]
    %v166 = vld [vmem:[#allocation8 + $0x8] sm:$0xff]
    %v167 = vld [vmem:[#allocation8 + $0x10] sm:$0xff]
    %v168 = vld [vmem:[#allocation8 + $0x18] sm:$0xff]
    %v169 = vld [vmem:[#allocation8 + $0x20] sm:$0xff]
    %v170 = vld [vmem:[#allocation8 + $0x28] sm:$0xff]
    %v171 = vld [vmem:[#allocation8 + $0x30] sm:$0xff]
    %v172 = vld [vmem:[#allocation8 + $0x38] sm:$0xff]
    %v173 = vld [vmem:[#allocation8 + $0x40] sm:$0xff]
    %v174 = vld [vmem:[#allocation8 + $0x48] sm:$0xff]
    %v175 = vld [vmem:[#allocation8 + $0x50] sm:$0xff]
    %v176 = vld [vmem:[#allocation8 + $0x58] sm:$0xff]
    %v177 = vld [vmem:[#allocation8 + $0x60] sm:$0xff]
    %v178 = vld [vmem:[#allocation8 + $0x68] sm:$0xff]
    %v179 = vld [vmem:[#allocation8 + $0x70] sm:$0xff]
    %v180 = vld [vmem:[#allocation8 + $0x78] sm:$0xff]
    %v181 = vld [vmem:[%s6] sm:$0x1]
    %v183 = vperm.slane %v181, 0
    %185 = vmatpush.msra.mxu0 %v180
    %186 = vmatpush.msra.mxu0 %v179
    %187 = vmatpush.msra.mxu0 %v178
    %188 = vmatpush.msra.mxu0 %v177
    %189 = vmatpush.msra.mxu0 %v176
    %190 = vmatpush.msra.mxu0 %v175
    %191 = vmatpush.msra.mxu0 %v174
    %192 = vmatpush.msra.mxu0 %v173
    %193 = vmatpush.msra.mxu0 %v172
    %194 = vmatpush.msra.mxu0 %v171
    %195 = vmatpush.msra.mxu0 %v170
    %196 = vmatpush.msra.mxu0 %v169
    %197 = vmatpush.msra.mxu0 %v168
    %198 = vmatpush.msra.mxu0 %v167
    %199 = vmatpush.msra.mxu0 %v166
    %200 = vmatpush.msra.mxu0 %v165
    %201 = vmatmul.f32.gmra.mxu0 %v164
    %v202 = vpop.f32.mrf.mxu0
    %v203 = vadd.f32 %v183, %v202
    %204 = vdwg.mxu0
    %205 = vst [vmem:[#allocation10] sm:$0xff] %v203
    // Predicated region
    $region46: #{tpu_custom_call.1} parent=1 // pred_check
      _
    $region47: #{tpu_custom_call.1} parent=1 // pred_check_branch
      %207 = sbr.rel (0) target = $region49
    $region48: #{tpu_custom_call.1} parent=1 // pred_region
      %209 = vsyncadd [#allocation4], 0
      %s211 = sshll.u32 [#allocation10], 4
      %s212 = int_to_ptr.vmem [resolvable:$true] %s211
      %s213 = sshll.u32 %s7, 4
      %s214 = int_to_ptr.hbm [resolvable:$true] %s213
      %216 = dma.vmem_to_hbm [thread:$0]  %s212, 128, %s214, [#allocation4]
    $region49: #{tpu_custom_call.1} parent=1 // pred_fallthru
      _
    // Predicated region
    $region50: #{tpu_custom_call.1} parent=1 // pred_check
      _
    $region51: #{tpu_custom_call.1} parent=1 // pred_check_branch
      %218 = sbr.rel (0) target = $region53
    $region52: #{tpu_custom_call.1} parent=1 // pred_region
      %220 = dma.done [#allocation4], 128
    $region53: #{tpu_custom_call.1} parent=1 // pred_fallthru
      _
    %221 = vsyncpa [#allocation3], 1
    %222 = vsyncpa [#allocation6], 1
    %223 = vsyncpa [#allocation9], 1
    %224 = vsyncpa [#allocation4], 1

</llo_original>
